<compile_context>
chip_gen: v7x
topology: tpu7x:2x2x1
jax: 0.10.0
libtpu: 0.0.40
codegen_flags: <defaults>
</compile_context>

<pallas_src>
import functools
import math

import jax
import jax.numpy as jnp
from jax.experimental import pallas as pl
from jax.experimental.pallas import tpu as pltpu

# ---- configuration -----------------------------------------------------------
INPUT_DIM = 32
OUTPUT_DIM = 32
NUM_OUTPUTS = 4
REPEAT_OUTPUT = True
NORMALIZE_INPUT = True
NUM_LAYERS = 3
HIDDEN_DIM = 32
LABEL_DIM = 8
EMBEDDING_DIM = 32
NORMALIZE_EMBEDDING = True
NORMALIZE_EMBEDDING_LATENT = True
EPS = 1e-8
LABEL_CONCAT = True
LR_MUL = 1.0
BATCH = 8

EMB_SCALE = 1.0 / math.sqrt(LABEL_DIM) * LR_MUL  # EqualLinear scale

# ---- packed weight-slab layout -------------------------------------------------
# Every weight matrix is stored pre-transposed as [in_features, out_features] so
# each layer is a plain `act @ W + b` on the MXU. Biases live in one extra row.
# Slab is lane-dense: 128 columns = exactly one vreg lane width.
SLAB_ROWS = 72            # 65 used (64 weight rows + 1 bias row), padded to x8
BIAS_ROW = 64
C_EMB = 0                 # cols   0: 32  embedding weight (scale folded in) + bias
C_W0 = 32                 # cols  32: 64  layer-0 weight (full 64-row block) + b0
C_W1 = 64                 # cols  64: 96  layer-1 weight                     + b1
C_W2 = 96                 # cols  96:128  layer-2 weight                     + b2
SLAB_COLS = 128

# ---- packed activation-input layout --------------------------------------------
IN_Z = 0                  # cols 0:32  -> z
IN_LBL = 32               # cols 32:40 -> label
IN_COLS = INPUT_DIM + LABEL_DIM

# ---- packed lane-dense output layout -------------------------------------------
OUT_ZN = 0                # lanes  0: 32 normalized z
OUT_EMB = 32              # lanes 32: 64 normalized embedding
OUT_W = 64                # lanes 64: 96 w (MLP output)
OUT_COLS = 128            # lanes 96:128 zero pad -> unmasked full-vreg store


def _round_up(x, m):
    return (x + m - 1) // m * m


# ---- Pallas kernel -------------------------------------------------------------
def mapping_kernel(x_ref, p_ref, o_ref, *, eps):
    f32 = jnp.float32
    z = x_ref[:, IN_Z:IN_Z + INPUT_DIM].astype(f32)
    lbl = x_ref[:, IN_LBL:IN_LBL + LABEL_DIM].astype(f32)

    # --- PixelNorm(z) over the feature axis ---
    z_sq = jnp.sum(z * z, axis=1, keepdims=True)
    inv_z = jax.lax.rsqrt(z_sq * (1.0 / INPUT_DIM) + eps)
    zn = z * inv_z

    # --- EqualLinear embedding: label @ (W*scale)^T + bias*lr_mul ---
    # (scale and lr_mul folded into the slab at pack time)
    emb = (jnp.dot(lbl, p_ref[0:LABEL_DIM, C_EMB:C_EMB + EMBEDDING_DIM],
                   preferred_element_type=f32)
           + p_ref[BIAS_ROW:BIAS_ROW + 1, C_EMB:C_EMB + EMBEDDING_DIM])

    # --- PixelNorm(embedding) ---
    e_sq = jnp.sum(emb * emb, axis=1, keepdims=True)
    inv_e = jax.lax.rsqrt(e_sq * (1.0 / EMBEDDING_DIM) + eps)
    en = emb * inv_e

    # --- PixelNorm(concat(zn, en)) scale without extra cross-lane reductions ---
    zn_sq = z_sq * inv_z * inv_z
    en_sq = e_sq * inv_e * inv_e
    w_scale = jax.lax.rsqrt(
        (zn_sq + en_sq) * (1.0 / (INPUT_DIM + EMBEDDING_DIM)) + eps)

    # Concat is needed for the output slab anyway; reuse it for layer 0.
    cat = jnp.concatenate([zn, en], axis=1)                     # [tb, 64]

    # --- layer 0: single 64x32 MXU matmul; per-row scale hoisted out of the dot:
    #     (cat * s) @ W0  ==  s * (cat @ W0)   (s is a per-row scalar) ---
    h = (jnp.dot(cat, p_ref[0:INPUT_DIM + EMBEDDING_DIM, C_W0:C_W0 + HIDDEN_DIM],
                 preferred_element_type=f32) * w_scale
         + p_ref[BIAS_ROW:BIAS_ROW + 1, C_W0:C_W0 + HIDDEN_DIM])
    h = jnp.maximum(h, 0.2 * h)

    # --- layer 1 ---
    h = (jnp.dot(h, p_ref[0:HIDDEN_DIM, C_W1:C_W1 + HIDDEN_DIM],
                 preferred_element_type=f32)
         + p_ref[BIAS_ROW:BIAS_ROW + 1, C_W1:C_W1 + HIDDEN_DIM])
    h = jnp.maximum(h, 0.2 * h)

    # --- layer 2 ---
    h = (jnp.dot(h, p_ref[0:HIDDEN_DIM, C_W2:C_W2 + OUTPUT_DIM],
                 preferred_element_type=f32)
         + p_ref[BIAS_ROW:BIAS_ROW + 1, C_W2:C_W2 + OUTPUT_DIM])
    h = jnp.maximum(h, 0.2 * h)

    # --- single lane-dense 128-wide store: [ zn | emb | w | pad ] ---
    o_ref[...] = jnp.concatenate([cat, h, jnp.zeros_like(h)], axis=1)


# ---- parameter init (deterministic, mirrors PyTorch shapes/inits) ---------------
def init_params(key):
    ks = jax.random.split(key, 2 * NUM_LAYERS + 1)
    # EqualLinear(label_dim -> embedding_dim): weight = randn(out, in)/lr_mul, bias=0
    emb_w = jax.random.normal(ks[0], (EMBEDDING_DIM, LABEL_DIM), jnp.float32) / LR_MUL
    emb_b = jnp.zeros((EMBEDDING_DIM,), jnp.float32)

    in_dims = [INPUT_DIM + EMBEDDING_DIM, HIDDEN_DIM, HIDDEN_DIM]
    out_dims = [HIDDEN_DIM, HIDDEN_DIM, OUTPUT_DIM]
    weights, biases = [], []
    for i, (di, do) in enumerate(zip(in_dims, out_dims)):
        bound = 1.0 / math.sqrt(di)  # nn.Linear default init
        w = jax.random.uniform(ks[1 + 2 * i], (do, di), jnp.float32, -bound, bound)
        b = jax.random.uniform(ks[2 + 2 * i], (do,), jnp.float32, -bound, bound)
        weights.append(w)
        biases.append(b)
    return dict(emb_w=emb_w, emb_b=emb_b, weights=weights, biases=biases)


# ---- one-time parameter packing (done outside the kernel) -----------------------
def pack_params(params):
    emb_w, emb_b = params["emb_w"], params["emb_b"]
    W0, W1, W2 = params["weights"]
    b0, b1, b2 = params["biases"]

    slab = jnp.zeros((SLAB_ROWS, SLAB_COLS), jnp.float32)
    slab = slab.at[0:LABEL_DIM, C_EMB:C_EMB + EMBEDDING_DIM].set((emb_w * EMB_SCALE).T)
    slab = slab.at[BIAS_ROW, C_EMB:C_EMB + EMBEDDING_DIM].set(emb_b * LR_MUL)
    slab = slab.at[0:INPUT_DIM + EMBEDDING_DIM, C_W0:C_W0 + HIDDEN_DIM].set(W0.T)
    slab = slab.at[BIAS_ROW, C_W0:C_W0 + HIDDEN_DIM].set(b0)
    slab = slab.at[0:HIDDEN_DIM, C_W1:C_W1 + HIDDEN_DIM].set(W1.T)
    slab = slab.at[BIAS_ROW, C_W1:C_W1 + HIDDEN_DIM].set(b1)
    slab = slab.at[0:HIDDEN_DIM, C_W2:C_W2 + OUTPUT_DIM].set(W2.T)
    slab = slab.at[BIAS_ROW, C_W2:C_W2 + OUTPUT_DIM].set(b2)
    return slab


# ---- wrapper --------------------------------------------------------------------
def mapping_network_forward(z, label, param_slab, *, max_tile_b=256):
    batch = z.shape[0]
    # Pack z and label into one activation slab -> single input DMA per tile.
    x = jnp.concatenate([z.astype(jnp.float32), label.astype(jnp.float32)], axis=1)

    # Batch tile: sublane-aligned (x8), capped so even large batches pipeline.
    tile_b = min(max_tile_b, _round_up(batch, 8))
    pad_b = _round_up(batch, tile_b)
    if pad_b != batch:
        x = jnp.pad(x, ((0, pad_b - batch), (0, 0)))

    kernel = functools.partial(mapping_kernel, eps=EPS)
    out = pl.pallas_call(
        kernel,
        out_shape=jax.ShapeDtypeStruct((pad_b, OUT_COLS), jnp.float32),
        grid_spec=pltpu.PrefetchScalarGridSpec(
            num_scalar_prefetch=0,
            grid=(pad_b // tile_b,),
            in_specs=[
                pl.BlockSpec((tile_b, IN_COLS), lambda i: (i, 0)),
                # constant index_map -> weight slab stays resident in VMEM
                pl.BlockSpec((SLAB_ROWS, SLAB_COLS), lambda i: (0, 0)),
            ],
            out_specs=pl.BlockSpec((tile_b, OUT_COLS), lambda i: (i, 0)),
        ),
        compiler_params=pltpu.CompilerParams(
            dimension_semantics=("parallel",)),
    )(x, param_slab)

    out = out[:batch]
    zn = out[:, OUT_ZN:OUT_ZN + INPUT_DIM]
    emb = out[:, OUT_EMB:OUT_EMB + EMBEDDING_DIM]
    w = out[:, OUT_W:OUT_W + OUTPUT_DIM]
    # repeat_output=True -> unsqueeze(1).repeat((1, num_outputs, 1))
    wp = jnp.broadcast_to(w[:, None, :], (batch, NUM_OUTPUTS, OUTPUT_DIM))
    return {"z": zn, "label": label, "w": w, "wp": wp, "embedding": emb}


# ---- pure-JAX reference for correctness check ------------------------------------
def reference_forward(z, label, params):
    def pnorm(x):
        return x * jax.lax.rsqrt(jnp.mean(x * x, axis=1, keepdims=True) + EPS)

    zn = pnorm(z)
    emb = label @ (params["emb_w"] * EMB_SCALE).T + params["emb_b"] * LR_MUL
    emb = pnorm(emb)
    w = jnp.concatenate([zn, emb], axis=1)
    w = pnorm(w)
    for W, b in zip(params["weights"], params["biases"]):
        w = w @ W.T + b
        w = jnp.where(w > 0, w, 0.2 * w)
    wp = jnp.repeat(w[:, None, :], NUM_OUTPUTS, axis=1)
    return {"z": zn, "label": label, "w": w, "wp": wp, "embedding": emb}


# ---- main -------------------------------------------------------------------------
if __name__ == "__main__":
    key = jax.random.PRNGKey(0)
    k_z, k_l, k_p = jax.random.split(key, 3)
    z = jax.random.normal(k_z, (BATCH, INPUT_DIM), jnp.float32)
    label = jax.random.normal(k_l, (BATCH, LABEL_DIM), jnp.float32)
    params = init_params(k_p)
    param_slab = pack_params(params)

    out = mapping_network_forward(z, label, param_slab)
    jax.block_until_ready(out)

    ref = reference_forward(z, label, params)
    for name in ("z", "w", "wp", "embedding"):
        assert jnp.allclose(out[name], ref[name], atol=1e-5, rtol=1e-5), name

    print("KERNEL_OK")
</pallas_src>

<mosaic_0001>
module attributes {stable_mosaic.version = 11 : i64} {
  func.func @mapping_kernel(%arg0: i32, %arg1: memref<8x40xf32, #tpu.memory_space<vmem>>, %arg2: memref<72x128xf32, #tpu.memory_space<vmem>>, %arg3: memref<8x128xf32, #tpu.memory_space<vmem>>) attributes {dimension_semantics = [#tpu.dimension_semantics<parallel>], iteration_bounds = array<i64: 1>, scalar_prefetch = 0 : i64, scratch_operands = 0 : i64, tpu.core_type = #tpu.core_type<tc>, window_params = [{transform_indices = @transform_0, window_bounds = array<i64: 8, 40>}, {pipeline_mode = #tpu.pipeline_mode<synchronous>, transform_indices = @transform_1, window_bounds = array<i64: 72, 128>}, {transform_indices = @transform_2, window_bounds = array<i64: 8, 128>}]} {
    %c0 = arith.constant 0 : index
    %c0_0 = arith.constant 0 : index
    %0 = vector.load %arg1[%c0, %c0_0] : memref<8x40xf32, #tpu.memory_space<vmem>>, vector<8x32xf32>
    %c0_1 = arith.constant 0 : index
    %c32 = arith.constant 32 : index
    %1 = vector.load %arg1[%c0_1, %c32] : memref<8x40xf32, #tpu.memory_space<vmem>>, vector<8x8xf32>
    %2 = arith.mulf %0, %0 : vector<8x32xf32>
    %cst = arith.constant dense<0.000000e+00> : vector<8xf32>
    %3 = vector.multi_reduction <add>, %2, %cst [1] : vector<8x32xf32> to vector<8xf32>
    %4 = vector.shape_cast %3 : vector<8xf32> to vector<8x1xf32>
    %cst_2 = arith.constant 3.125000e-02 : f32
    %5 = vector.broadcast %cst_2 : f32 to vector<8x1xf32>
    %6 = arith.mulf %4, %5 : vector<8x1xf32>
    %cst_3 = arith.constant 9.99999993E-9 : f32
    %7 = vector.broadcast %cst_3 : f32 to vector<8x1xf32>
    %8 = arith.addf %6, %7 : vector<8x1xf32>
    %9 = math.rsqrt %8 : vector<8x1xf32>
    %10 = vector.broadcast %9 : vector<8x1xf32> to vector<8x32xf32>
    %11 = arith.mulf %0, %10 : vector<8x32xf32>
    %c0_4 = arith.constant 0 : index
    %c0_5 = arith.constant 0 : index
    %12 = vector.load %arg2[%c0_4, %c0_5] : memref<72x128xf32, #tpu.memory_space<vmem>>, vector<8x32xf32>
    %cst_6 = arith.constant dense<0.000000e+00> : vector<8x32xf32>
    %13 = tpu.matmul %1, %12, %cst_6 {dimension_numbers = #tpu.dot_dimension_numbers<[1], [0], [0], [1], [0, 0, 1, 1], [], []>} : vector<8x8xf32>, vector<8x32xf32>, vector<8x32xf32> -> vector<8x32xf32>
    %c64 = arith.constant 64 : index
    %c0_7 = arith.constant 0 : index
    %14 = vector.load %arg2[%c64, %c0_7] : memref<72x128xf32, #tpu.memory_space<vmem>>, vector<1x32xf32>
    %15 = vector.broadcast %14 : vector<1x32xf32> to vector<8x32xf32>
    %16 = arith.addf %13, %15 : vector<8x32xf32>
    %17 = arith.mulf %16, %16 : vector<8x32xf32>
    %cst_8 = arith.constant dense<0.000000e+00> : vector<8xf32>
    %18 = vector.multi_reduction <add>, %17, %cst_8 [1] : vector<8x32xf32> to vector<8xf32>
    %19 = vector.shape_cast %18 : vector<8xf32> to vector<8x1xf32>
    %cst_9 = arith.constant 3.125000e-02 : f32
    %20 = vector.broadcast %cst_9 : f32 to vector<8x1xf32>
    %21 = arith.mulf %19, %20 : vector<8x1xf32>
    %cst_10 = arith.constant 9.99999993E-9 : f32
    %22 = vector.broadcast %cst_10 : f32 to vector<8x1xf32>
    %23 = arith.addf %21, %22 : vector<8x1xf32>
    %24 = math.rsqrt %23 : vector<8x1xf32>
    %25 = vector.broadcast %24 : vector<8x1xf32> to vector<8x32xf32>
    %26 = arith.mulf %16, %25 : vector<8x32xf32>
    %27 = arith.mulf %4, %9 : vector<8x1xf32>
    %28 = arith.mulf %27, %9 : vector<8x1xf32>
    %29 = arith.mulf %19, %24 : vector<8x1xf32>
    %30 = arith.mulf %29, %24 : vector<8x1xf32>
    %31 = arith.addf %28, %30 : vector<8x1xf32>
    %cst_11 = arith.constant 1.562500e-02 : f32
    %32 = vector.broadcast %cst_11 : f32 to vector<8x1xf32>
    %33 = arith.mulf %31, %32 : vector<8x1xf32>
    %cst_12 = arith.constant 9.99999993E-9 : f32
    %34 = vector.broadcast %cst_12 : f32 to vector<8x1xf32>
    %35 = arith.addf %33, %34 : vector<8x1xf32>
    %36 = math.rsqrt %35 : vector<8x1xf32>
    %37 = tpu.concatenate %11, %26 in 1 : vector<8x32xf32>, vector<8x32xf32> -> vector<8x64xf32>
    %c0_13 = arith.constant 0 : index
    %c32_14 = arith.constant 32 : index
    %38 = vector.load %arg2[%c0_13, %c32_14] : memref<72x128xf32, #tpu.memory_space<vmem>>, vector<64x32xf32>
    %cst_15 = arith.constant dense<0.000000e+00> : vector<8x32xf32>
    %39 = tpu.matmul %37, %38, %cst_15 {dimension_numbers = #tpu.dot_dimension_numbers<[1], [0], [0], [1], [0, 0, 1, 1], [], []>} : vector<8x64xf32>, vector<64x32xf32>, vector<8x32xf32> -> vector<8x32xf32>
    %40 = vector.broadcast %36 : vector<8x1xf32> to vector<8x32xf32>
    %41 = arith.mulf %39, %40 : vector<8x32xf32>
    %c64_16 = arith.constant 64 : index
    %c32_17 = arith.constant 32 : index
    %42 = vector.load %arg2[%c64_16, %c32_17] : memref<72x128xf32, #tpu.memory_space<vmem>>, vector<1x32xf32>
    %43 = vector.broadcast %42 : vector<1x32xf32> to vector<8x32xf32>
    %44 = arith.addf %41, %43 : vector<8x32xf32>
    %cst_18 = arith.constant 2.000000e-01 : f32
    %45 = vector.broadcast %cst_18 : f32 to vector<8x32xf32>
    %46 = arith.mulf %45, %44 : vector<8x32xf32>
    %47 = arith.maximumf %44, %46 : vector<8x32xf32>
    %c0_19 = arith.constant 0 : index
    %c64_20 = arith.constant 64 : index
    %48 = vector.load %arg2[%c0_19, %c64_20] : memref<72x128xf32, #tpu.memory_space<vmem>>, vector<32x32xf32>
    %cst_21 = arith.constant dense<0.000000e+00> : vector<8x32xf32>
    %49 = tpu.matmul %47, %48, %cst_21 {dimension_numbers = #tpu.dot_dimension_numbers<[1], [0], [0], [1], [0, 0, 1, 1], [], []>} : vector<8x32xf32>, vector<32x32xf32>, vector<8x32xf32> -> vector<8x32xf32>
    %c64_22 = arith.constant 64 : index
    %c64_23 = arith.constant 64 : index
    %50 = vector.load %arg2[%c64_22, %c64_23] : memref<72x128xf32, #tpu.memory_space<vmem>>, vector<1x32xf32>
    %51 = vector.broadcast %50 : vector<1x32xf32> to vector<8x32xf32>
    %52 = arith.addf %49, %51 : vector<8x32xf32>
    %cst_24 = arith.constant 2.000000e-01 : f32
    %53 = vector.broadcast %cst_24 : f32 to vector<8x32xf32>
    %54 = arith.mulf %53, %52 : vector<8x32xf32>
    %55 = arith.maximumf %52, %54 : vector<8x32xf32>
    %c0_25 = arith.constant 0 : index
    %c96 = arith.constant 96 : index
    %56 = vector.load %arg2[%c0_25, %c96] : memref<72x128xf32, #tpu.memory_space<vmem>>, vector<32x32xf32>
    %cst_26 = arith.constant dense<0.000000e+00> : vector<8x32xf32>
    %57 = tpu.matmul %55, %56, %cst_26 {dimension_numbers = #tpu.dot_dimension_numbers<[1], [0], [0], [1], [0, 0, 1, 1], [], []>} : vector<8x32xf32>, vector<32x32xf32>, vector<8x32xf32> -> vector<8x32xf32>
    %c64_27 = arith.constant 64 : index
    %c96_28 = arith.constant 96 : index
    %58 = vector.load %arg2[%c64_27, %c96_28] : memref<72x128xf32, #tpu.memory_space<vmem>>, vector<1x32xf32>
    %59 = vector.broadcast %58 : vector<1x32xf32> to vector<8x32xf32>
    %60 = arith.addf %57, %59 : vector<8x32xf32>
    %cst_29 = arith.constant 2.000000e-01 : f32
    %61 = vector.broadcast %cst_29 : f32 to vector<8x32xf32>
    %62 = arith.mulf %61, %60 : vector<8x32xf32>
    %63 = arith.maximumf %60, %62 : vector<8x32xf32>
    %cst_30 = arith.constant 0.000000e+00 : f32
    %64 = vector.broadcast %cst_30 : f32 to vector<8x32xf32>
    %65 = tpu.concatenate %37, %63, %64 in 1 : vector<8x64xf32>, vector<8x32xf32>, vector<8x32xf32> -> vector<8x128xf32>
    %c0_31 = arith.constant 0 : index
    %c0_32 = arith.constant 0 : index
    %66 = vector.load %arg3[%c0_31, %c0_32] : memref<8x128xf32, #tpu.memory_space<vmem>>, vector<8x128xf32>
    tpu.vector_store %arg3[%c0_31, %c0_32], %65 {strides = array<i32>} : memref<8x128xf32, #tpu.memory_space<vmem>>, vector<8x128xf32>,
    return
  }
  func.func @transform_0(%arg0: i32) -> (i32, i32) {
    %c0_i32 = arith.constant 0 : i32
    %c0_i32_0 = arith.constant 0 : i32
    return %arg0, %c0_i32 : i32, i32
  }
  func.func @transform_1(%arg0: i32) -> (i32, i32) {
    %c0_i32 = arith.constant 0 : i32
    %c0_i32_0 = arith.constant 0 : i32
    %c0_i32_1 = arith.constant 0 : i32
    return %c0_i32, %c0_i32_0 : i32, i32
  }
  func.func @transform_2(%arg0: i32) -> (i32, i32) {
    %c0_i32 = arith.constant 0 : i32
    %c0_i32_0 = arith.constant 0 : i32
    return %arg0, %c0_i32 : i32, i32
  }
}

</mosaic_0001>

<llo_original>
// kernel: tpu_custom_call.1
$region0: #{tpu_custom_call.1}
  #allocation0 [shape = 'u32[]', space=smem, size = 0x4, offset = 0x4, fixed_abs, tag = 'smem constant byte address 0x4 - core index']
  #allocation1 [shape = 'u32[144,128]{1,0:T(1,128)}', space=vmem, size = 0x12000, scoped, tag = 'internal scratch']
  %s0 = inlined_call_operand.hbm [shape: f32[8,40], index: 0, kind: input, shape index: {}]
  %s1 = inlined_call_operand.hbm [shape: f32[72,128], index: 1, kind: input, shape index: {}]
  %s2 = inlined_call_operand.hbm [shape: f32[8,128], index: 2, kind: output, shape index: {}]
  %s3 = sld [smem:[#allocation0]]
  $region26: #{tpu_custom_call.1} parent=0
    _
  %s5 = ssub.s32 1, %s3
  %s6 = scalar_select 0, %s5, %s3
  $region1: #{tpu_custom_call.1} parent=0
    #allocation2 [shape = 'u8[4096]{0}', space=vmem, size = 0x1000, scoped, tag = 'input window, operand 0, single buffered']
    #allocation3 [shape = 's32[1]{0}', space=sflag, size = 0x4, scoped, tag = 'scoped memory for tpu_custom_call.1']
    #allocation4 [shape = 's32[1]{0}', space=sflag, size = 0x4, scoped, tag = 'scoped memory for tpu_custom_call.1']
    #allocation5 [shape = 'u8[36864]{0}', space=vmem, size = 0x9000, scoped, tag = 'input window, operand 1, single buffered']
    #allocation6 [shape = 's32[1]{0}', space=sflag, size = 0x4, scoped, tag = 'scoped memory for tpu_custom_call.1']
    #allocation7 [shape = 'u8[4096]{0}', space=vmem, size = 0x1000, scoped, tag = 'output window, operand 0, single buffered']
    %7 = vsyncpa [#allocation3], 0
    %8 = vsyncpa [#allocation6], 0
    %9 = vsyncpa [#allocation4], 0
    // Predicated region
    $region2: #{tpu_custom_call.1} parent=1 // pred_check
      _
    $region3: #{tpu_custom_call.1} parent=1 // pred_check_branch
      %11 = sbr.rel (0) target = $region5
    $region4: #{tpu_custom_call.1} parent=1 // pred_region
      %s13 = ssub.s32 128, 128
      %14 = vsyncadd [#allocation3], %s13
      %s16 = sshll.u32 [#allocation2], 4
      %s17 = int_to_ptr.vmem [resolvable:$true] %s16
      %19 = dma.hbm_to_vmem [thread:$0]  %s0, 128, %s17, [#allocation3]
    $region5: #{tpu_custom_call.1} parent=1 // pred_fallthru
      _
    // Predicated region
    $region6: #{tpu_custom_call.1} parent=1 // pred_check
      _
    $region7: #{tpu_custom_call.1} parent=1 // pred_check_branch
      %21 = sbr.rel (0) target = $region9
    $region8: #{tpu_custom_call.1} parent=1 // pred_region
      %s23 = ssub.s32 1152, 1152
      %24 = vsyncadd [#allocation6], %s23
      %s25 = sshll.u32 [#allocation5], 4
      %s26 = int_to_ptr.vmem [resolvable:$true] %s25
      %31 = dma.hbm_to_vmem [thread:$0]  %s1, 1152, %s26, [#allocation6], 128, 128, 8
    $region9: #{tpu_custom_call.1} parent=1 // pred_fallthru
      _
    // Predicated region
    $region10: #{tpu_custom_call.1} parent=1 // pred_check
      _
    $region11: #{tpu_custom_call.1} parent=1 // pred_check_branch
      %33 = sbr.rel (0) target = $region13
    $region12: #{tpu_custom_call.1} parent=1 // pred_region
      %34 = dma.done [#allocation3], 128
    $region13: #{tpu_custom_call.1} parent=1 // pred_fallthru
      _
    // Predicated region
    $region14: #{tpu_custom_call.1} parent=1 // pred_check
      _
    $region15: #{tpu_custom_call.1} parent=1 // pred_check_branch
      %36 = sbr.rel (0) target = $region17
    $region16: #{tpu_custom_call.1} parent=1 // pred_region
      %37 = dma.done [#allocation6], 1152
    $region17: #{tpu_custom_call.1} parent=1 // pred_fallthru
      _
    %v38 = vld [vmem:[#allocation2] sm:$0xff]
    %v39 = vmul.f32 %v38, %v38
    %vm40 = vcmask 261120
    %v41 = vsel %vm40, %v39, 0.0
    %42 = vadd.xlane.f32.xlu0 %v41
    %v43 = vpop.xlane.xlu0 %42
    %v44 = vmul.f32 %v43, 0.03125
    %v45 = vadd.f32 %v44, 1e-08
    %v46 = vrsqrt.pop %v45
    %v47 = vmul.f32 %v38, %v46
    %v48 = vld [vmem:[#allocation5] sm:$0xff]
    %v49 = vld [vmem:[#allocation5 + $0x40] sm:$0x1]
    %v50 = vlaneseq
    %v51 = vshrl.u32 %v50, 7
    %v52 = vsub.s32 0, %v51
    %v53 = vrot.slane %v49, %v52
    %55 = vrot.lane.b32.xlu0 %v38, 96
    %v56 = vpop.permute.xlu0 %55
    %vm57 = vcmask 64512
    %v58 = vsel %vm57, %v56, 0
    %60 = vmatprep.subr.mxu0 0.0
    %61 = vmatpush1.msra.mxu0 %v48
    %62 = vmatprep.subr.mxu0 0.0
    %63 = vmatpush1.msra.mxu0 0.0
    %64 = vmatprep.subr.mxu0 0.0
    %65 = vmatpush1.msra.mxu0 0.0
    %66 = vmatprep.subr.mxu0 0.0
    %67 = vmatpush1.msra.mxu0 0.0
    %68 = vmatprep.subr.mxu0 0.0
    %69 = vmatpush1.msra.mxu0 0.0
    %70 = vmatprep.subr.mxu0 0.0
    %71 = vmatpush1.msra.mxu0 0.0
    %72 = vmatprep.subr.mxu0 0.0
    %73 = vmatpush1.msra.mxu0 0.0
    %74 = vmatprep.subr.mxu0 0.0
    %75 = vmatpush1.msra.mxu0 0.0
    %76 = vmatprep.subr.mxu0 0.0
    %77 = vmatpush1.msra.mxu0 0.0
    %78 = vmatprep.subr.mxu0 0.0
    %79 = vmatpush1.msra.mxu0 0.0
    %80 = vmatprep.subr.mxu0 0.0
    %81 = vmatpush1.msra.mxu0 0.0
    %82 = vmatprep.subr.mxu0 0.0
    %83 = vmatpush1.msra.mxu0 0.0
    %84 = vmatprep.subr.mxu0 0.0
    %85 = vmatpush1.msra.mxu0 0.0
    %86 = vmatprep.subr.mxu0 0.0
    %87 = vmatpush1.msra.mxu0 0.0
    %88 = vmatprep.subr.mxu0 0.0
    %89 = vmatpush1.msra.mxu0 0.0
    %90 = vmatprep.subr.mxu0 0.0
    %91 = vmatpush1.msra.mxu0 0.0
    %92 = vmatprep.subr.mxu0 0.0
    %93 = vmatpush1.msra.mxu0 0.0
    %94 = vmatprep.subr.mxu0 0.0
    %95 = vmatpush1.msra.mxu0 0.0
    %96 = vmatprep.subr.mxu0 0.0
    %97 = vmatpush1.msra.mxu0 0.0
    %98 = vmatprep.subr.mxu0 0.0
    %99 = vmatpush1.msra.mxu0 0.0
    %100 = vmatprep.subr.mxu0 0.0
    %101 = vmatpush1.msra.mxu0 0.0
    %102 = vmatprep.subr.mxu0 0.0
    %103 = vmatpush1.msra.mxu0 0.0
    %104 = vmatprep.subr.mxu0 0.0
    %105 = vmatpush1.msra.mxu0 0.0
    %106 = vmatprep.subr.mxu0 0.0
    %107 = vmatpush1.msra.mxu0 0.0
    %108 = vmatprep.subr.mxu0 0.0
    %109 = vmatpush1.msra.mxu0 0.0
    %110 = vmatprep.subr.mxu0 0.0
    %111 = vmatpush1.msra.mxu0 0.0
    %112 = vmatprep.subr.mxu0 0.0
    %113 = vmatpush1.msra.mxu0 0.0
    %114 = vmatprep.subr.mxu0 0.0
    %115 = vmatpush1.msra.mxu0 0.0
    %116 = vmatprep.subr.mxu0 0.0
    %117 = vmatpush1.msra.mxu0 0.0
    %118 = vmatprep.subr.mxu0 0.0
    %119 = vmatpush1.msra.mxu0 0.0
    %120 = vmatprep.subr.mxu0 0.0
    %121 = vmatpush1.msra.mxu0 0.0
    %122 = vmatprep.subr.mxu0 0.0
    %123 = vmatpush1.msra.mxu0 0.0
    %124 = vmatprep.mubr.f32.mxu0 0.0
    %125 = vmatmul.mubr.f32.gmra.mrb[0].mxu0 %v58
    %v126 = vpop.f32.mrb[0].mxu0
    %v127 = vadd.f32 %v53, %v126
    %v128 = vpop.f32.mrb[0].mxu0
    %129 = vdwg.mxu0
    %v130 = vmul.f32 %v127, %v127
    %v131 = vsel %vm40, %v130, 0.0
    %132 = vadd.xlane.f32.xlu0 %v131
    %v133 = vpop.xlane.xlu0 %132
    %v134 = vmul.f32 %v133, 0.03125
    %v135 = vadd.f32 %v134, 1e-08
    %v136 = vrsqrt.pop %v135
    %v137 = vmul.f32 %v127, %v136
    %v138 = vmul.f32 %v43, %v46
    %v139 = vmul.f32 %v138, %v46
    %v140 = vmul.f32 %v133, %v136
    %v141 = vmul.f32 %v140, %v136
    %v142 = vadd.f32 %v139, %v141
    %v143 = vmul.f32 %v142, 0.015625
    %v144 = vadd.f32 %v143, 1e-08
    %v145 = vrsqrt.pop %v144
    %147 = vrot.lane.b32.xlu0 %v137, 32
    %v148 = vpop.permute.xlu0 %147
    %v150 = vsel %vm40, %v47, %v148
    %v151 = vld [vmem:[#allocation5] sm:$0xff]
    %v152 = vld [vmem:[#allocation5 + $0x8] sm:$0xff]
    %v153 = vld [vmem:[#allocation5 + $0x10] sm:$0xff]
    %v154 = vld [vmem:[#allocation5 + $0x18] sm:$0xff]
    %v155 = vld [vmem:[#allocation5 + $0x20] sm:$0xff]
    %v156 = vld [vmem:[#allocation5 + $0x28] sm:$0xff]
    %v157 = vld [vmem:[#allocation5 + $0x30] sm:$0xff]
    %v158 = vld [vmem:[#allocation5 + $0x38] sm:$0xff]
    %167 = vrot.lane.b32.xlu0 %v151, 96
    %v168 = vpop.permute.xlu0 %167
    %169 = vrot.lane.b32.xlu0 %v152, 96
    %v170 = vpop.permute.xlu0 %169
    %171 = vrot.lane.b32.xlu0 %v153, 96
    %v172 = vpop.permute.xlu0 %171
    %173 = vrot.lane.b32.xlu0 %v154, 96
    %v174 = vpop.permute.xlu0 %173
    %175 = vrot.lane.b32.xlu0 %v155, 96
    %v176 = vpop.permute.xlu0 %175
    %177 = vrot.lane.b32.xlu0 %v156, 96
    %v178 = vpop.permute.xlu0 %177
    %179 = vrot.lane.b32.xlu0 %v157, 96
    %v180 = vpop.permute.xlu0 %179
    %181 = vrot.lane.b32.xlu0 %v158, 96
    %v182 = vpop.permute.xlu0 %181
    %vm191 = vcmask 523264
    %v193 = vsel %vm191, %v150, 0
    %195 = vmatprep.subr.mxu0 0.0
    %196 = vmatpush1.msra.mxu0 %v168
    %197 = vmatprep.subr.mxu0 0.0
    %198 = vmatpush1.msra.mxu0 %v170
    %199 = vmatprep.subr.mxu0 0.0
    %200 = vmatpush1.msra.mxu0 %v172
    %201 = vmatprep.subr.mxu0 0.0
    %202 = vmatpush1.msra.mxu0 %v174
    %203 = vmatprep.subr.mxu0 0.0
    %204 = vmatpush1.msra.mxu0 %v176
    %205 = vmatprep.subr.mxu0 0.0
    %206 = vmatpush1.msra.mxu0 %v178
    %207 = vmatprep.subr.mxu0 0.0
    %208 = vmatpush1.msra.mxu0 %v180
    %209 = vmatprep.subr.mxu0 0.0
    %210 = vmatpush1.msra.mxu0 %v182
    %211 = vmatprep.subr.mxu0 0.0
    %212 = vmatpush1.msra.mxu0 0.0
    %213 = vmatprep.subr.mxu0 0.0
    %214 = vmatpush1.msra.mxu0 0.0
    %215 = vmatprep.subr.mxu0 0.0
    %216 = vmatpush1.msra.mxu0 0.0
    %217 = vmatprep.subr.mxu0 0.0
    %218 = vmatpush1.msra.mxu0 0.0
    %219 = vmatprep.subr.mxu0 0.0
    %220 = vmatpush1.msra.mxu0 0.0
    %221 = vmatprep.subr.mxu0 0.0
    %222 = vmatpush1.msra.mxu0 0.0
    %223 = vmatprep.subr.mxu0 0.0
    %224 = vmatpush1.msra.mxu0 0.0
    %225 = vmatprep.subr.mxu0 0.0
    %226 = vmatpush1.msra.mxu0 0.0
    %227 = vmatprep.subr.mxu0 0.0
    %228 = vmatpush1.msra.mxu0 0.0
    %229 = vmatprep.subr.mxu0 0.0
    %230 = vmatpush1.msra.mxu0 0.0
    %231 = vmatprep.subr.mxu0 0.0
    %232 = vmatpush1.msra.mxu0 0.0
    %233 = vmatprep.subr.mxu0 0.0
    %234 = vmatpush1.msra.mxu0 0.0
    %235 = vmatprep.subr.mxu0 0.0
    %236 = vmatpush1.msra.mxu0 0.0
    %237 = vmatprep.subr.mxu0 0.0
    %238 = vmatpush1.msra.mxu0 0.0
    %239 = vmatprep.subr.mxu0 0.0
    %240 = vmatpush1.msra.mxu0 0.0
    %241 = vmatprep.subr.mxu0 0.0
    %242 = vmatpush1.msra.mxu0 0.0
    %243 = vmatprep.subr.mxu0 0.0
    %244 = vmatpush1.msra.mxu0 0.0
    %245 = vmatprep.subr.mxu0 0.0
    %246 = vmatpush1.msra.mxu0 0.0
    %247 = vmatprep.subr.mxu0 0.0
    %248 = vmatpush1.msra.mxu0 0.0
    %249 = vmatprep.subr.mxu0 0.0
    %250 = vmatpush1.msra.mxu0 0.0
    %251 = vmatprep.subr.mxu0 0.0
    %252 = vmatpush1.msra.mxu0 0.0
    %253 = vmatprep.subr.mxu0 0.0
    %254 = vmatpush1.msra.mxu0 0.0
    %255 = vmatprep.subr.mxu0 0.0
    %256 = vmatpush1.msra.mxu0 0.0
    %257 = vmatprep.subr.mxu0 0.0
    %258 = vmatpush1.msra.mxu0 0.0
    %259 = vmatprep.mubr.f32.mxu0 0.0
    %260 = vmatmul.mubr.f32.gmra.mrb[0].mxu0 %v193
    %v261 = vpop.f32.mrb[0].mxu0
    %v262 = vadd.f32 0.0, %v261
    %v263 = vpop.f32.mrb[0].mxu0
    %264 = vdwg.mxu0
    %v265 = vmul.f32 %v262, %v145
    %267 = vrot.lane.b32.xlu0 %v53, 96
    %v268 = vpop.permute.xlu0 %267
    %v270 = vadd.f32 %v265, %v268
    %v271 = vmul.f32 %v270, 0.2
    %v272 = vmax.f32 %v270, %v271
    %v273 = vld [vmem:[#allocation5] sm:$0xff]
    %v274 = vld [vmem:[#allocation5 + $0x8] sm:$0xff]
    %v275 = vld [vmem:[#allocation5 + $0x10] sm:$0xff]
    %v276 = vld [vmem:[#allocation5 + $0x18] sm:$0xff]
    %281 = vrot.lane.b32.xlu0 %v273, 64
    %v282 = vpop.permute.xlu0 %281
    %283 = vrot.lane.b32.xlu0 %v274, 64
    %v284 = vpop.permute.xlu0 %283
    %285 = vrot.lane.b32.xlu0 %v275, 64
    %v286 = vpop.permute.xlu0 %285
    %287 = vrot.lane.b32.xlu0 %v276, 64
    %v288 = vpop.permute.xlu0 %287
    %293 = vrot.lane.b32.xlu0 %v53, 64
    %v294 = vpop.permute.xlu0 %293
    %v297 = vsel %vm40, %v272, 0
    %299 = vmatprep.subr.mxu0 0.0
    %300 = vmatpush1.msra.mxu0 %v282
    %301 = vmatprep.subr.mxu0 0.0
    %302 = vmatpush1.msra.mxu0 %v284
    %303 = vmatprep.subr.mxu0 0.0
    %304 = vmatpush1.msra.mxu0 %v286
    %305 = vmatprep.subr.mxu0 0.0
    %306 = vmatpush1.msra.mxu0 %v288
    %307 = vmatprep.subr.mxu0 0.0
    %308 = vmatpush1.msra.mxu0 0.0
    %309 = vmatprep.subr.mxu0 0.0
    %310 = vmatpush1.msra.mxu0 0.0
    %311 = vmatprep.subr.mxu0 0.0
    %312 = vmatpush1.msra.mxu0 0.0
    %313 = vmatprep.subr.mxu0 0.0
    %314 = vmatpush1.msra.mxu0 0.0
    %315 = vmatprep.subr.mxu0 0.0
    %316 = vmatpush1.msra.mxu0 0.0
    %317 = vmatprep.subr.mxu0 0.0
    %318 = vmatpush1.msra.mxu0 0.0
    %319 = vmatprep.subr.mxu0 0.0
    %320 = vmatpush1.msra.mxu0 0.0
    %321 = vmatprep.subr.mxu0 0.0
    %322 = vmatpush1.msra.mxu0 0.0
    %323 = vmatprep.subr.mxu0 0.0
    %324 = vmatpush1.msra.mxu0 0.0
    %325 = vmatprep.subr.mxu0 0.0
    %326 = vmatpush1.msra.mxu0 0.0
    %327 = vmatprep.subr.mxu0 0.0
    %328 = vmatpush1.msra.mxu0 0.0
    %329 = vmatprep.subr.mxu0 0.0
    %330 = vmatpush1.msra.mxu0 0.0
    %331 = vmatprep.subr.mxu0 0.0
    %332 = vmatpush1.msra.mxu0 0.0
    %333 = vmatprep.subr.mxu0 0.0
    %334 = vmatpush1.msra.mxu0 0.0
    %335 = vmatprep.subr.mxu0 0.0
    %336 = vmatpush1.msra.mxu0 0.0
    %337 = vmatprep.subr.mxu0 0.0
    %338 = vmatpush1.msra.mxu0 0.0
    %339 = vmatprep.subr.mxu0 0.0
    %340 = vmatpush1.msra.mxu0 0.0
    %341 = vmatprep.subr.mxu0 0.0
    %342 = vmatpush1.msra.mxu0 0.0
    %343 = vmatprep.subr.mxu0 0.0
    %344 = vmatpush1.msra.mxu0 0.0
    %345 = vmatprep.subr.mxu0 0.0
    %346 = vmatpush1.msra.mxu0 0.0
    %347 = vmatprep.subr.mxu0 0.0
    %348 = vmatpush1.msra.mxu0 0.0
    %349 = vmatprep.subr.mxu0 0.0
    %350 = vmatpush1.msra.mxu0 0.0
    %351 = vmatprep.subr.mxu0 0.0
    %352 = vmatpush1.msra.mxu0 0.0
    %353 = vmatprep.subr.mxu0 0.0
    %354 = vmatpush1.msra.mxu0 0.0
    %355 = vmatprep.subr.mxu0 0.0
    %356 = vmatpush1.msra.mxu0 0.0
    %357 = vmatprep.subr.mxu0 0.0
    %358 = vmatpush1.msra.mxu0 0.0
    %359 = vmatprep.subr.mxu0 0.0
    %360 = vmatpush1.msra.mxu0 0.0
    %361 = vmatprep.subr.mxu0 0.0
    %362 = vmatpush1.msra.mxu0 0.0
    %363 = vmatprep.mubr.f32.mxu0 0.0
    %364 = vmatmul.mubr.f32.gmra.mrb[0].mxu0 %v297
    %v365 = vpop.f32.mrb[0].mxu0
    %v366 = vadd.f32 %v294, %v365
    %v367 = vpop.f32.mrb[0].mxu0
    %368 = vdwg.mxu0
    %v369 = vmul.f32 %v366, 0.2
    %v370 = vmax.f32 %v366, %v369
    %371 = vrot.lane.b32.xlu0 %v273, 32
    %v372 = vpop.permute.xlu0 %371
    %373 = vrot.lane.b32.xlu0 %v274, 32
    %v374 = vpop.permute.xlu0 %373
    %375 = vrot.lane.b32.xlu0 %v275, 32
    %v376 = vpop.permute.xlu0 %375
    %377 = vrot.lane.b32.xlu0 %v276, 32
    %v378 = vpop.permute.xlu0 %377
    %383 = vrot.lane.b32.xlu0 %v53, 32
    %v384 = vpop.permute.xlu0 %383
    %v387 = vsel %vm40, %v370, 0
    %389 = vmatprep.subr.mxu0 0.0
    %390 = vmatpush1.msra.mxu0 %v372
    %391 = vmatprep.subr.mxu0 0.0
    %392 = vmatpush1.msra.mxu0 %v374
    %393 = vmatprep.subr.mxu0 0.0
    %394 = vmatpush1.msra.mxu0 %v376
    %395 = vmatprep.subr.mxu0 0.0
    %396 = vmatpush1.msra.mxu0 %v378
    %397 = vmatprep.subr.mxu0 0.0
    %398 = vmatpush1.msra.mxu0 0.0
    %399 = vmatprep.subr.mxu0 0.0
    %400 = vmatpush1.msra.mxu0 0.0
    %401 = vmatprep.subr.mxu0 0.0
    %402 = vmatpush1.msra.mxu0 0.0
    %403 = vmatprep.subr.mxu0 0.0
    %404 = vmatpush1.msra.mxu0 0.0
    %405 = vmatprep.subr.mxu0 0.0
    %406 = vmatpush1.msra.mxu0 0.0
    %407 = vmatprep.subr.mxu0 0.0
    %408 = vmatpush1.msra.mxu0 0.0
    %409 = vmatprep.subr.mxu0 0.0
    %410 = vmatpush1.msra.mxu0 0.0
    %411 = vmatprep.subr.mxu0 0.0
    %412 = vmatpush1.msra.mxu0 0.0
    %413 = vmatprep.subr.mxu0 0.0
    %414 = vmatpush1.msra.mxu0 0.0
    %415 = vmatprep.subr.mxu0 0.0
    %416 = vmatpush1.msra.mxu0 0.0
    %417 = vmatprep.subr.mxu0 0.0
    %418 = vmatpush1.msra.mxu0 0.0
    %419 = vmatprep.subr.mxu0 0.0
    %420 = vmatpush1.msra.mxu0 0.0
    %421 = vmatprep.subr.mxu0 0.0
    %422 = vmatpush1.msra.mxu0 0.0
    %423 = vmatprep.subr.mxu0 0.0
    %424 = vmatpush1.msra.mxu0 0.0
    %425 = vmatprep.subr.mxu0 0.0
    %426 = vmatpush1.msra.mxu0 0.0
    %427 = vmatprep.subr.mxu0 0.0
    %428 = vmatpush1.msra.mxu0 0.0
    %429 = vmatprep.subr.mxu0 0.0
    %430 = vmatpush1.msra.mxu0 0.0
    %431 = vmatprep.subr.mxu0 0.0
    %432 = vmatpush1.msra.mxu0 0.0
    %433 = vmatprep.subr.mxu0 0.0
    %434 = vmatpush1.msra.mxu0 0.0
    %435 = vmatprep.subr.mxu0 0.0
    %436 = vmatpush1.msra.mxu0 0.0
    %437 = vmatprep.subr.mxu0 0.0
    %438 = vmatpush1.msra.mxu0 0.0
    %439 = vmatprep.subr.mxu0 0.0
    %440 = vmatpush1.msra.mxu0 0.0
    %441 = vmatprep.subr.mxu0 0.0
    %442 = vmatpush1.msra.mxu0 0.0
    %443 = vmatprep.subr.mxu0 0.0
    %444 = vmatpush1.msra.mxu0 0.0
    %445 = vmatprep.subr.mxu0 0.0
    %446 = vmatpush1.msra.mxu0 0.0
    %447 = vmatprep.subr.mxu0 0.0
    %448 = vmatpush1.msra.mxu0 0.0
    %449 = vmatprep.subr.mxu0 0.0
    %450 = vmatpush1.msra.mxu0 0.0
    %451 = vmatprep.subr.mxu0 0.0
    %452 = vmatpush1.msra.mxu0 0.0
    %453 = vmatprep.mubr.f32.mxu0 0.0
    %454 = vmatmul.mubr.f32.gmra.mrb[0].mxu0 %v387
    %v455 = vpop.f32.mrb[0].mxu0
    %v456 = vadd.f32 %v384, %v455
    %v457 = vpop.f32.mrb[0].mxu0
    %458 = vdwg.mxu0
    %v459 = vmul.f32 %v456, 0.2
    %v460 = vmax.f32 %v456, %v459
    %462 = vrot.lane.b32.xlu0 %v460, 64
    %v463 = vpop.permute.xlu0 %462
    %v465 = vsel %vm191, %v150, %v463
    %vm466 = vcmask 785408
    %v467 = vsel %vm466, %v465, 0.0
    %468 = vst [vmem:[#allocation7] sm:$0xff] %v467
    // Predicated region
    $region18: #{tpu_custom_call.1} parent=1 // pred_check
      _
    $region19: #{tpu_custom_call.1} parent=1 // pred_check_branch
      %470 = sbr.rel (0) target = $region21
    $region20: #{tpu_custom_call.1} parent=1 // pred_region
      %s472 = ssub.s32 128, 128
      %473 = vsyncadd [#allocation4], %s472
      %s475 = sshll.u32 [#allocation7], 4
      %s476 = int_to_ptr.vmem [resolvable:$true] %s475
      %478 = dma.vmem_to_hbm [thread:$0]  %s476, 128, %s2, [#allocation4]
    $region21: #{tpu_custom_call.1} parent=1 // pred_fallthru
      _
    // Predicated region
    $region22: #{tpu_custom_call.1} parent=1 // pred_check
      _
    $region23: #{tpu_custom_call.1} parent=1 // pred_check_branch
      %480 = sbr.rel (0) target = $region25
    $region24: #{tpu_custom_call.1} parent=1 // pred_region
      %481 = dma.done [#allocation4], 128
    $region25: #{tpu_custom_call.1} parent=1 // pred_fallthru
      _
    %482 = vsyncpa [#allocation3], 1
    %483 = vsyncpa [#allocation6], 1
    %484 = vsyncpa [#allocation4], 1

</llo_original>
